<compile_context>
chip_gen: v7x
topology: tpu7x:2x2x1
jax: 0.10.0
libtpu: 0.0.40
codegen_flags: <defaults>
</compile_context>

<pallas_src>
import functools

import jax
import jax.numpy as jnp
from jax.experimental import pallas as pl
from jax.experimental.pallas import tpu as pltpu

LRELU_SLOPE = 0.1


# ----------------------------- Pallas kernels --------------------------------
def _matmul_kernel_single(x_ref, w_ref, b_ref, o_ref, *, apply_act):
    """Single K block: out = act(X @ W + b) written directly (no scratch accumulator)."""
    out = jnp.dot(x_ref[0], w_ref[0], preferred_element_type=jnp.float32) + b_ref[0]
    if apply_act:
        out = jnp.where(out >= 0, out, LRELU_SLOPE * out)
    o_ref[0] = out.astype(o_ref.dtype)


def _matmul_kernel_multi(x_ref, w_ref, b_ref, o_ref, acc_ref, *, apply_act):
    """K-tiled: acc += X @ W over grid axis 3; bias + leaky_relu fused on the last K step."""
    k = pl.program_id(3)

    @pl.when(k == 0)
    def _init():
        acc_ref[...] = jnp.zeros_like(acc_ref)

    acc_ref[...] += jnp.dot(x_ref[0], w_ref[0], preferred_element_type=jnp.float32)

    @pl.when(k == pl.num_programs(3) - 1)
    def _finalize():
        out = acc_ref[...] + b_ref[0]
        if apply_act:
            out = jnp.where(out >= 0, out, LRELU_SLOPE * out)
        o_ref[0] = out.astype(o_ref.dtype)


def _round_up(x, m):
    return (x + m - 1) // m * m


def fused_matmul_bias_act(x, w, b, apply_act):
    """out[g] = leaky_relu(x[g] @ w[g] + b[g]) (activation optional), f32 output.

    x: [G, M, K]   w: [G, K, N]   b: [G, N]   ->   [G, M, N]
    bf16 MXU inputs, f32 accumulate.
    """
    G, M, K = x.shape
    Gw, Kw, N = w.shape
    assert Gw == G and Kw == K

    # ---- tile selection (portable across v5e / v6e / v7x) ----
    tm = 256 if M >= 256 else max(16, _round_up(M, 16))   # 16-mult for bf16 sublane packing
    tn = 256 if N >= 256 else _round_up(N, 128)           # lane-dense output stores
    Kp = _round_up(K, 128)
    if Kp <= 2048:
        tk = Kp                  # single K step; operand blocks stay ~1 MB
    else:
        tk = 512                 # K-tiled accumulator
        Kp = _round_up(K, tk)
    Mp, Np = _round_up(M, tm), _round_up(N, tn)
    nk = Kp // tk

    xp = jnp.pad(x, ((0, 0), (0, Mp - M), (0, Kp - K))).astype(jnp.bfloat16)
    wp = jnp.pad(w, ((0, 0), (0, Kp - K), (0, Np - N))).astype(jnp.bfloat16)
    bp = jnp.pad(b, ((0, 0), (0, Np - N))).reshape(G, 1, Np).astype(jnp.float32)

    if nk == 1:
        kernel = functools.partial(_matmul_kernel_single, apply_act=apply_act)
        scratch = ()
    else:
        kernel = functools.partial(_matmul_kernel_multi, apply_act=apply_act)
        scratch = (pltpu.VMEM((tm, tn), jnp.float32),)

    out = pl.pallas_call(
        kernel,
        out_shape=jax.ShapeDtypeStruct((G, Mp, Np), jnp.float32),
        grid_spec=pltpu.PrefetchScalarGridSpec(
            num_scalar_prefetch=0,
            grid=(G, Mp // tm, Np // tn, nk),
            in_specs=[
                pl.BlockSpec((1, tm, tk), lambda g, i, j, k: (g, i, k)),   # X tile
                pl.BlockSpec((1, tk, tn), lambda g, i, j, k: (g, k, j)),   # W tile
                pl.BlockSpec((1, 1, tn), lambda g, i, j, k: (g, 0, j)),    # bias tile
            ],
            out_specs=pl.BlockSpec((1, tm, tn), lambda g, i, j, k: (g, i, j)),
            scratch_shapes=scratch,
        ),
        compiler_params=pltpu.CompilerParams(
            dimension_semantics=("parallel", "parallel", "parallel", "arbitrary"),
            vmem_limit_bytes=32 * 1024 * 1024,
        ),
    )(xp, wp, bp)
    # Keep the slice: padded rows/cols get bias+act applied but must never reach feat/score.
    return out[:, :M, :N]


# ----------------------------- Conv1d layer (grouped or not) -----------------
def conv1d_layer(x, weight, bias, stride, padding, groups, apply_act):
    """Conv1d (optionally grouped), zero padding.

    x:      [B, T, Cin]  (channels last)
    weight: [Cout, Cin//groups, k] (PyTorch layout),  bias: [Cout]
    returns [B, Tout, Cout]
    """
    B, T, Cin = x.shape
    Cout, Cin_g, k = weight.shape
    xp = jnp.pad(x, ((0, 0), (padding, padding), (0, 0)))
    Tout = (T + 2 * padding - k) // stride + 1

    # TODO(synk): strided im2col is materialized in XLA; folding the k taps into the Pallas
    # contraction (shifted blocks) needs manual DMA for stride>1 and is left out here.
    idx = stride * jnp.arange(Tout)[:, None] + jnp.arange(k)[None, :]
    patches = xp[:, idx, :]                              # [B, Tout, k, Cin]
    M = B * Tout

    G = groups
    Cout_g = Cout // G
    # Group-chunking: pack GC groups so each matmul has >=128 lane-dense output channels.
    # Within a chunk the weight is block-diagonal (GC x FLOP waste) -- far cheaper than the
    # full G x block-diagonal expansion, and the chunk axis becomes a parallel grid axis.
    if G == 1:
        GC = 1
    else:
        GC = max(1, min(G, 128 // max(1, Cout_g)))
        while G % GC != 0:
            GC -= 1
    NC = G // GC                                          # number of group-chunks
    Kc = k * GC * Cin_g                                   # contraction per chunk
    Nc = GC * Cout_g                                      # output channels per chunk

    # X: [M, k, Cin] -> [NC, M, k*GC*Cin_g]   (channels are group-major, so a plain reshape)
    Xc = patches.reshape(M, k, NC, GC * Cin_g)
    Xc = jnp.transpose(Xc, (2, 0, 1, 3)).reshape(NC, M, Kc)

    # W: [Cout, Cin_g, k] -> per-chunk block-diagonal [NC, k*GC*Cin_g, GC*Cout_g]
    wt = jnp.transpose(weight, (2, 1, 0)).reshape(k, Cin_g, NC, GC, Cout_g)
    eye = jnp.eye(GC, dtype=weight.dtype)
    Wc = jnp.einsum("tingo,gb->ntgibo", wt, eye).reshape(NC, Kc, Nc)

    bc = bias.reshape(NC, Nc)

    out = fused_matmul_bias_act(Xc, Wc, bc, apply_act)    # [NC, M, Nc]
    out = jnp.transpose(out, (1, 0, 2)).reshape(M, Cout)  # group-major channel order
    return out.reshape(B, Tout, Cout)


# ----------------------------- Conv2d (k,1) layer (DiscriminatorP) ----------
def conv2d_kx1_layer(x, weight, bias, stride, padding, apply_act):
    """Conv2d with kernel (k,1), stride (s,1), zero padding (p,0).

    x:      [B, W, H, Cin]   (W = period column, H = time axis, channels last)
    weight: [Cout, Cin, k, 1] (PyTorch layout),  bias: [Cout]
    returns [B, W, Hout, Cout]

    A (k,1) conv is a Conv1d along H applied independently per W column.
    """
    B, W, H, Cin = x.shape
    Cout = weight.shape[0]
    h = conv1d_layer(x.reshape(B * W, H, Cin), weight[..., 0], bias,
                     stride, padding, 1, apply_act)
    Hout = h.shape[1]
    return h.reshape(B, W, Hout, Cout)


# ----------------------------- DiscriminatorP -------------------------------
def init_discriminator_p_params(key, kernel_size=5, stride=3):
    # weight_norm at init is identity on the effective weight, so plain random init is used.
    chans = [(1, 32), (32, 128), (128, 512), (512, 1024), (1024, 1024)]
    pad = (kernel_size - 1) // 2
    convs = []
    for i, (cin, cout) in enumerate(chans):
        key, kw, kb = jax.random.split(key, 3)
        s = stride if i < 4 else 1
        p = pad if i < 4 else 2
        w = jax.random.normal(kw, (cout, cin, kernel_size, 1), jnp.float32) * 0.05
        b = jax.random.normal(kb, (cout,), jnp.float32) * 0.05
        convs.append((w, b, s, p))
    key, kw, kb = jax.random.split(key, 3)
    w_post = jax.random.normal(kw, (1, 1024, 3, 1), jnp.float32) * 0.05
    b_post = jax.random.normal(kb, (1,), jnp.float32) * 0.05
    return {"convs": convs, "conv_post": (w_post, b_post, 1, 1)}


def discriminator_p_forward(x, params, period):
    """x: [B, 1, T] -> (scores [B, Hout*W], feat: list of NCHW tensors)."""
    B, C, T = x.shape
    if T % period != 0:
        n_pad = period - T % period
        x = jnp.pad(x, ((0, 0), (0, 0), (0, n_pad)), mode="reflect")
        T = T + n_pad
    x4 = x.reshape(B, C, T // period, period)           # matches torch .view
    h = jnp.transpose(x4, (0, 3, 2, 1))                 # internal: [B, W=period, H, Cin]

    feat = []
    for (w, b, s, p) in params["convs"]:
        h = conv2d_kx1_layer(h, w, b, s, p, apply_act=True)
        # NCHW transpose is output formatting only; the layer chain stays channels-last.
        feat.append(jnp.transpose(h, (0, 3, 2, 1)))

    w, b, s, p = params["conv_post"]
    h = conv2d_kx1_layer(h, w, b, s, p, apply_act=False)
    out_nchw = jnp.transpose(h, (0, 3, 2, 1))           # [B, 1, Hout, W]
    feat.append(out_nchw)

    score = out_nchw.reshape(B, -1)                     # torch.flatten(x, 1, -1)
    return score, feat


# ----------------------------- DiscriminatorS -------------------------------
def init_discriminator_s_params(key):
    cfg = [  # (cin, cout, k, stride, pad, groups)
        (1, 16, 15, 1, 7, 1),
        (16, 64, 41, 4, 20, 4),
        (64, 256, 41, 4, 20, 16),
        (256, 1024, 41, 4, 20, 64),
        (1024, 1024, 41, 4, 20, 256),
        (1024, 1024, 5, 1, 2, 1),
    ]
    convs = []
    for (cin, cout, k, s, p, g) in cfg:
        key, kw, kb = jax.random.split(key, 3)
        w = jax.random.normal(kw, (cout, cin // g, k), jnp.float32) * 0.05
        b = jax.random.normal(kb, (cout,), jnp.float32) * 0.05
        convs.append((w, b, s, p, g))
    key, kw, kb = jax.random.split(key, 3)
    w_post = jax.random.normal(kw, (1, 1024, 3), jnp.float32) * 0.05
    b_post = jax.random.normal(kb, (1,), jnp.float32) * 0.05
    return {"convs": convs, "conv_post": (w_post, b_post, 1, 1, 1)}


def discriminator_s_forward(x, params):
    """x: [B, 1, T] -> (scores [B, Tout], feat: list of NCT tensors)."""
    B, _, _ = x.shape
    h = jnp.transpose(x, (0, 2, 1))                     # [B, T, C] channels-last
    feat = []
    for (w, b, s, p, g) in params["convs"]:
        h = conv1d_layer(h, w, b, s, p, g, apply_act=True)
        feat.append(jnp.transpose(h, (0, 2, 1)))        # back to [B, C, T] for the feature list
    w, b, s, p, g = params["conv_post"]
    h = conv1d_layer(h, w, b, s, p, g, apply_act=False)
    out_nct = jnp.transpose(h, (0, 2, 1))               # [B, 1, Tout]
    feat.append(out_nct)
    score = out_nct.reshape(B, -1)
    return score, feat


# ----------------------------- VitsDiscriminator ----------------------------
def init_vits_discriminator_params(key, periods=(2, 3, 5, 7, 11)):
    key, ks = jax.random.split(key)
    params = {"s": init_discriminator_s_params(ks), "p": []}
    for _ in periods:
        key, kp = jax.random.split(key)
        params["p"].append(init_discriminator_p_params(kp))
    return params, tuple(periods)


def vits_discriminator_forward(x, params, periods, x_hat=None):
    def run(wave):
        scores, feats = [], []
        s_score, s_feat = discriminator_s_forward(wave, params["s"])
        scores.append(s_score)
        feats.append(s_feat)
        for p_params, period in zip(params["p"], periods):
            p_score, p_feat = discriminator_p_forward(wave, p_params, period)
            scores.append(p_score)
            feats.append(p_feat)
        return scores, feats

    x_scores, x_feats = run(x)
    if x_hat is not None:
        x_hat_scores, x_hat_feats = run(x_hat)
    else:
        x_hat_scores, x_hat_feats = None, None
    return x_scores, x_feats, x_hat_scores, x_hat_feats


if __name__ == "__main__":
    key = jax.random.PRNGKey(0)
    k_x, k_xh, k_params = jax.random.split(key, 3)

    B, T = 2, 45                                     # small; exercises reflect-pad for several periods
    x = jax.random.normal(k_x, (B, 1, T), jnp.float32)
    x_hat = jax.random.normal(k_xh, (B, 1, T), jnp.float32)

    params, periods = init_vits_discriminator_params(k_params)

    x_scores, x_feats, xh_scores, xh_feats = vits_discriminator_forward(
        x, params, periods, x_hat=x_hat)
    jax.block_until_ready((x_scores, x_feats, xh_scores, xh_feats))

    assert len(x_scores) == 6 and len(x_feats) == 6            # 1 scale + 5 period discriminators
    assert len(x_feats[0]) == 7                                # DiscriminatorS: 6 convs + post
    assert all(len(f) == 6 for f in x_feats[1:])               # DiscriminatorP: 5 convs + post
    assert xh_scores is not None and len(xh_scores) == 6
    assert all(s.ndim == 2 and s.shape[0] == B for s in x_scores)
    assert all(jnp.all(jnp.isfinite(s)) for s in x_scores)
    print("KERNEL_OK")
</pallas_src>

<mosaic_0001>
module attributes {stable_mosaic.version = 11 : i64} {
  func.func @_matmul_kernel_single(%arg0: i32, %arg1: i32, %arg2: i32, %arg3: i32, %arg4: memref<1x96x128xbf16, #tpu.memory_space<vmem>>, %arg5: memref<1x128x128xbf16, #tpu.memory_space<vmem>>, %arg6: memref<1x1x128xf32, #tpu.memory_space<vmem>>, %arg7: memref<1x96x128xf32, #tpu.memory_space<vmem>>) attributes {dimension_semantics = [#tpu.dimension_semantics<parallel>, #tpu.dimension_semantics<parallel>, #tpu.dimension_semantics<parallel>, #tpu.dimension_semantics<arbitrary>], iteration_bounds = array<i64: 1, 1, 1, 1>, scalar_prefetch = 0 : i64, scratch_operands = 0 : i64, tpu.core_type = #tpu.core_type<tc>, window_params = [{transform_indices = @transform_0, window_bounds = array<i64: 1, 96, 128>}, {transform_indices = @transform_1, window_bounds = array<i64: 1, 128, 128>}, {transform_indices = @transform_2, window_bounds = array<i64: 1, 1, 128>}, {transform_indices = @transform_3, window_bounds = array<i64: 1, 96, 128>}]} {
    %c0 = arith.constant 0 : index
    %c0_0 = arith.constant 0 : index
    %c0_1 = arith.constant 0 : index
    %0 = vector.load %arg4[%c0, %c0_0, %c0_1] : memref<1x96x128xbf16, #tpu.memory_space<vmem>>, vector<1x96x128xbf16>
    %1 = vector.shape_cast %0 : vector<1x96x128xbf16> to vector<96x128xbf16>
    %c0_2 = arith.constant 0 : index
    %c0_3 = arith.constant 0 : index
    %c0_4 = arith.constant 0 : index
    %2 = vector.load %arg5[%c0_2, %c0_3, %c0_4] : memref<1x128x128xbf16, #tpu.memory_space<vmem>>, vector<1x128x128xbf16>
    %3 = vector.shape_cast %2 : vector<1x128x128xbf16> to vector<128x128xbf16>
    %cst = arith.constant dense<0.000000e+00> : vector<96x128xf32>
    %4 = tpu.matmul %1, %3, %cst {dimension_numbers = #tpu.dot_dimension_numbers<[1], [0], [0], [1], [0, 0, 1, 1], [], []>} : vector<96x128xbf16>, vector<128x128xbf16>, vector<96x128xf32> -> vector<96x128xf32>
    %c0_5 = arith.constant 0 : index
    %c0_6 = arith.constant 0 : index
    %c0_7 = arith.constant 0 : index
    %5 = vector.load %arg6[%c0_5, %c0_6, %c0_7] : memref<1x1x128xf32, #tpu.memory_space<vmem>>, vector<1x1x128xf32>
    %6 = vector.shape_cast %5 : vector<1x1x128xf32> to vector<1x128xf32>
    %7 = vector.broadcast %6 : vector<1x128xf32> to vector<96x128xf32>
    %8 = arith.addf %4, %7 : vector<96x128xf32>
    %cst_8 = arith.constant 0.000000e+00 : f32
    %9 = vector.broadcast %cst_8 : f32 to vector<96x128xf32>
    %10 = arith.cmpf oge, %8, %9 : vector<96x128xf32>
    %cst_9 = arith.constant 1.000000e-01 : f32
    %11 = vector.broadcast %cst_9 : f32 to vector<96x128xf32>
    %12 = arith.mulf %11, %8 : vector<96x128xf32>
    %13 = arith.select %10, %8, %12 : vector<96x128xi1>, vector<96x128xf32>
    %c0_10 = arith.constant 0 : index
    %c0_11 = arith.constant 0 : index
    %c0_12 = arith.constant 0 : index
    %14 = vector.load %arg7[%c0_10, %c0_11, %c0_12] : memref<1x96x128xf32, #tpu.memory_space<vmem>>, vector<1x96x128xf32>
    %15 = vector.shape_cast %14 : vector<1x96x128xf32> to vector<96x128xf32>
    %16 = vector.shape_cast %13 : vector<96x128xf32> to vector<1x96x128xf32>
    tpu.vector_store %arg7[%c0_10, %c0_11, %c0_12], %16 {strides = array<i32>} : memref<1x96x128xf32, #tpu.memory_space<vmem>>, vector<1x96x128xf32>,
    return
  }
  func.func @transform_0(%arg0: i32, %arg1: i32, %arg2: i32, %arg3: i32) -> (i32, i32, i32) {
    %c0_i32 = arith.constant 0 : i32
    return %arg0, %arg1, %arg3 : i32, i32, i32
  }
  func.func @transform_1(%arg0: i32, %arg1: i32, %arg2: i32, %arg3: i32) -> (i32, i32, i32) {
    %c0_i32 = arith.constant 0 : i32
    return %arg0, %arg3, %arg2 : i32, i32, i32
  }
  func.func @transform_2(%arg0: i32, %arg1: i32, %arg2: i32, %arg3: i32) -> (i32, i32, i32) {
    %c0_i32 = arith.constant 0 : i32
    %c0_i32_0 = arith.constant 0 : i32
    return %arg0, %c0_i32, %arg2 : i32, i32, i32
  }
  func.func @transform_3(%arg0: i32, %arg1: i32, %arg2: i32, %arg3: i32) -> (i32, i32, i32) {
    %c0_i32 = arith.constant 0 : i32
    return %arg0, %arg1, %arg2 : i32, i32, i32
  }
}

</mosaic_0001>

<llo_original>
// kernel: tpu_custom_call.1
$region0: #{tpu_custom_call.1}
  #allocation0 [shape = 'u32[]', space=smem, size = 0x4, offset = 0x4, fixed_abs, tag = 'smem constant byte address 0x4 - core index']
  #allocation1 [shape = 'u32[144,128]{1,0:T(1,128)}', space=vmem, size = 0x12000, scoped, tag = 'internal scratch']
  %s0 = inlined_call_operand.hbm [shape: bf16[1,96,128], index: 0, kind: input, shape index: {}]
  %s1 = inlined_call_operand.hbm [shape: bf16[1,128,128], index: 1, kind: input, shape index: {}]
  %s2 = inlined_call_operand.vmem [shape: f32[1,1,128], index: 2, kind: input, shape index: {}]
  %s3 = inlined_call_operand.hbm [shape: f32[1,96,128], index: 3, kind: output, shape index: {}]
  %s4 = sld [smem:[#allocation0]]
  $region30: #{tpu_custom_call.1} parent=0
    _
  %s6 = ssub.s32 1, %s4
  %s7 = scalar_select 0, %s6, %s4
  $region1: #{tpu_custom_call.1} parent=0
    #allocation2 [shape = 'u8[24576]{0}', space=vmem, size = 0x6000, scoped, tag = 'input window, operand 0, single buffered']
    #allocation3 [shape = 's32[1]{0}', space=sflag, size = 0x4, scoped, tag = 'scoped memory for tpu_custom_call.1']
    #allocation4 [shape = 's32[1]{0}', space=sflag, size = 0x4, scoped, tag = 'scoped memory for tpu_custom_call.1']
    #allocation5 [shape = 'u8[32768]{0}', space=vmem, size = 0x8000, scoped, tag = 'input window, operand 1, single buffered']
    #allocation6 [shape = 's32[1]{0}', space=sflag, size = 0x4, scoped, tag = 'scoped memory for tpu_custom_call.1']
    #allocation7 [shape = 'u8[49152]{0}', space=vmem, size = 0xc000, scoped, tag = 'output window, operand 0, single buffered']
    %8 = vsyncpa [#allocation3], 0
    %9 = vsyncpa [#allocation6], 0
    %10 = vsyncpa [#allocation4], 0
    // Predicated region
    $region2: #{tpu_custom_call.1} parent=1 // pred_check
      _
    $region3: #{tpu_custom_call.1} parent=1 // pred_check_branch
      %12 = sbr.rel (0) target = $region5
    $region4: #{tpu_custom_call.1} parent=1 // pred_region
      %s14 = ssub.s32 768, 768
      %15 = vsyncadd [#allocation3], %s14
      %s16 = sshll.u32 [#allocation2], 4
      %s17 = int_to_ptr.vmem [resolvable:$true] %s16
      %22 = dma.hbm_to_vmem [thread:$0]  %s0, 768, %s17, [#allocation3], 64, 64, 4
    $region5: #{tpu_custom_call.1} parent=1 // pred_fallthru
      _
    // Predicated region
    $region6: #{tpu_custom_call.1} parent=1 // pred_check
      _
    $region7: #{tpu_custom_call.1} parent=1 // pred_check_branch
      %24 = sbr.rel (0) target = $region9
    $region8: #{tpu_custom_call.1} parent=1 // pred_region
      %s26 = ssub.s32 1024, 1024
      %27 = vsyncadd [#allocation6], %s26
      %s28 = sshll.u32 [#allocation5], 4
      %s29 = int_to_ptr.vmem [resolvable:$true] %s28
      %34 = dma.hbm_to_vmem [thread:$0]  %s1, 1024, %s29, [#allocation6], 64, 64, 4
    $region9: #{tpu_custom_call.1} parent=1 // pred_fallthru
      _
    // Predicated region
    $region10: #{tpu_custom_call.1} parent=1 // pred_check
      _
    $region11: #{tpu_custom_call.1} parent=1 // pred_check_branch
      %36 = sbr.rel (0) target = $region13
    $region12: #{tpu_custom_call.1} parent=1 // pred_region
      _
    $region13: #{tpu_custom_call.1} parent=1 // pred_fallthru
      _
    // Predicated region
    $region14: #{tpu_custom_call.1} parent=1 // pred_check
      _
    $region15: #{tpu_custom_call.1} parent=1 // pred_check_branch
      %38 = sbr.rel (0) target = $region17
    $region16: #{tpu_custom_call.1} parent=1 // pred_region
      %39 = dma.done [#allocation3], 768
    $region17: #{tpu_custom_call.1} parent=1 // pred_fallthru
      _
    // Predicated region
    $region18: #{tpu_custom_call.1} parent=1 // pred_check
      _
    $region19: #{tpu_custom_call.1} parent=1 // pred_check_branch
      %41 = sbr.rel (0) target = $region21
    $region20: #{tpu_custom_call.1} parent=1 // pred_region
      %42 = dma.done [#allocation6], 1024
    $region21: #{tpu_custom_call.1} parent=1 // pred_fallthru
      _
    %v44 = vld [vmem:[#allocation2] sm:$0xf]
    %v45 = vld [vmem:[#allocation2 + $0x4] sm:$0xf]
    %v46 = vld [vmem:[#allocation2 + $0x8] sm:$0xf]
    %v47 = vld [vmem:[#allocation2 + $0xc] sm:$0xf]
    %v48 = vld [vmem:[#allocation2 + $0x10] sm:$0xf]
    %v49 = vld [vmem:[#allocation2 + $0x14] sm:$0xf]
    %v50 = vld [vmem:[#allocation2 + $0x18] sm:$0xf]
    %v51 = vld [vmem:[#allocation2 + $0x1c] sm:$0xf]
    %v52 = vld [vmem:[#allocation2 + $0x20] sm:$0xf]
    %v53 = vld [vmem:[#allocation2 + $0x24] sm:$0xf]
    %v54 = vld [vmem:[#allocation2 + $0x28] sm:$0xf]
    %v55 = vld [vmem:[#allocation2 + $0x2c] sm:$0xf]
    %v56 = vld [vmem:[#allocation5] sm:$0xf]
    %v57 = vld [vmem:[#allocation5 + $0x4] sm:$0xf]
    %v58 = vld [vmem:[#allocation5 + $0x8] sm:$0xf]
    %v59 = vld [vmem:[#allocation5 + $0xc] sm:$0xf]
    %v60 = vld [vmem:[#allocation5 + $0x10] sm:$0xf]
    %v61 = vld [vmem:[#allocation5 + $0x14] sm:$0xf]
    %v62 = vld [vmem:[#allocation5 + $0x18] sm:$0xf]
    %v63 = vld [vmem:[#allocation5 + $0x1c] sm:$0xf]
    %v64 = vld [vmem:[#allocation5 + $0x20] sm:$0xf]
    %v65 = vld [vmem:[#allocation5 + $0x24] sm:$0xf]
    %v66 = vld [vmem:[#allocation5 + $0x28] sm:$0xf]
    %v67 = vld [vmem:[#allocation5 + $0x2c] sm:$0xf]
    %v68 = vld [vmem:[#allocation5 + $0x30] sm:$0xf]
    %v69 = vld [vmem:[#allocation5 + $0x34] sm:$0xf]
    %v70 = vld [vmem:[#allocation5 + $0x38] sm:$0xf]
    %v71 = vld [vmem:[#allocation5 + $0x3c] sm:$0xf]
    %v72 = vld [vmem:[%s2] sm:$0x1]
    %v74 = vlaneseq
    %v75 = vshrl.u32 %v74, 7
    %v76 = vsub.s32 0, %v75
    %v77 = vrot.slane %v72, %v76
    %v91 = vunpack.c.l.b16 %v44
    %v92 = vunpack.c.l.b16 %v45
    %v93 = vunpack.c.l.b16 %v46
    %v94 = vunpack.c.l.b16 %v47
    %v95 = vunpack.c.l.b16 %v48
    %v96 = vunpack.c.l.b16 %v49
    %v97 = vunpack.c.l.b16 %v50
    %v98 = vunpack.c.l.b16 %v51
    %v99 = vunpack.c.l.b16 %v52
    %v100 = vunpack.c.l.b16 %v53
    %v101 = vunpack.c.l.b16 %v54
    %v102 = vunpack.c.l.b16 %v55
    %v103 = vpack.c.b16 %v92, %v91
    %v104 = vpack.c.b16 %v94, %v93
    %v105 = vpack.c.b16 %v96, %v95
    %v106 = vpack.c.b16 %v98, %v97
    %v107 = vpack.c.b16 %v100, %v99
    %v108 = vpack.c.b16 %v102, %v101
    %v131 = vunpack.c.l.b16 %v56
    %v132 = vunpack.c.l.b16 %v57
    %v133 = vunpack.c.l.b16 %v58
    %v134 = vunpack.c.l.b16 %v59
    %v135 = vunpack.c.l.b16 %v60
    %v136 = vunpack.c.l.b16 %v61
    %v137 = vunpack.c.l.b16 %v62
    %v138 = vunpack.c.l.b16 %v63
    %v139 = vunpack.c.l.b16 %v64
    %v140 = vunpack.c.l.b16 %v65
    %v141 = vunpack.c.l.b16 %v66
    %v142 = vunpack.c.l.b16 %v67
    %v143 = vunpack.c.l.b16 %v68
    %v144 = vunpack.c.l.b16 %v69
    %v145 = vunpack.c.l.b16 %v70
    %v146 = vunpack.c.l.b16 %v71
    %v147 = vpack.c.b16 %v132, %v131
    %v148 = vpack.c.b16 %v134, %v133
    %v149 = vpack.c.b16 %v136, %v135
    %v150 = vpack.c.b16 %v138, %v137
    %v151 = vpack.c.b16 %v140, %v139
    %v152 = vpack.c.b16 %v142, %v141
    %v153 = vpack.c.b16 %v144, %v143
    %v154 = vpack.c.b16 %v146, %v145
    %163 = vmatprep.subr.bf16.mxu0 0
    %164 = vmatpush1.bf16.msra.mxu0 %v147
    %165 = vmatprep.subr.bf16.mxu0 0
    %166 = vmatpush1.bf16.msra.mxu0 %v148
    %167 = vmatprep.subr.bf16.mxu0 0
    %168 = vmatpush1.bf16.msra.mxu0 %v149
    %169 = vmatprep.subr.bf16.mxu0 0
    %170 = vmatpush1.bf16.msra.mxu0 %v150
    %171 = vmatprep.subr.bf16.mxu0 0
    %172 = vmatpush1.bf16.msra.mxu0 %v151
    %173 = vmatprep.subr.bf16.mxu0 0
    %174 = vmatpush1.bf16.msra.mxu0 %v152
    %175 = vmatprep.subr.bf16.mxu0 0
    %176 = vmatpush1.bf16.msra.mxu0 %v153
    %177 = vmatprep.subr.bf16.mxu0 0
    %178 = vmatpush1.bf16.msra.mxu0 %v154
    %179 = vmatprep.subr.bf16.mxu0 0
    %180 = vmatpush1.bf16.msra.mxu0 0
    %181 = vmatprep.subr.bf16.mxu0 0
    %182 = vmatpush1.bf16.msra.mxu0 0
    %183 = vmatprep.subr.bf16.mxu0 0
    %184 = vmatpush1.bf16.msra.mxu0 0
    %185 = vmatprep.subr.bf16.mxu0 0
    %186 = vmatpush1.bf16.msra.mxu0 0
    %187 = vmatprep.subr.bf16.mxu0 0
    %188 = vmatpush1.bf16.msra.mxu0 0
    %189 = vmatprep.subr.bf16.mxu0 0
    %190 = vmatpush1.bf16.msra.mxu0 0
    %191 = vmatprep.subr.bf16.mxu0 0
    %192 = vmatpush1.bf16.msra.mxu0 0
    %193 = vmatprep.subr.bf16.mxu0 0
    %194 = vmatpush1.bf16.msra.mxu0 0
    %195 = vmatprep.mubr.bf16.mxu0 0
    %196 = vmatmul.mubr.bf16.gmra.mrb[0].mxu0 %v103
    %v197 = vpop.f32.mrb[0].mxu0
    %v198 = vadd.f32 %v77, %v197
    %v199 = vpop.f32.mrb[0].mxu0
    %v200 = vpop.f32.mrb[0].mxu0
    %v201 = vadd.f32 %v77, %v200
    %v202 = vpop.f32.mrb[0].mxu0
    %203 = vmatprep.mubr.bf16.mxu0 0
    %204 = vmatmul.mubr.bf16.gmra.mrb[0].mxu0 %v104
    %v205 = vpop.f32.mrb[0].mxu0
    %v206 = vadd.f32 %v77, %v205
    %v207 = vpop.f32.mrb[0].mxu0
    %v208 = vpop.f32.mrb[0].mxu0
    %v209 = vadd.f32 %v77, %v208
    %v210 = vpop.f32.mrb[0].mxu0
    %211 = vmatprep.mubr.bf16.mxu0 0
    %212 = vmatmul.mubr.bf16.gmra.mrb[0].mxu0 %v105
    %v213 = vpop.f32.mrb[0].mxu0
    %v214 = vadd.f32 %v77, %v213
    %v215 = vpop.f32.mrb[0].mxu0
    %v216 = vpop.f32.mrb[0].mxu0
    %v217 = vadd.f32 %v77, %v216
    %v218 = vpop.f32.mrb[0].mxu0
    %219 = vmatprep.mubr.bf16.mxu0 0
    %220 = vmatmul.mubr.bf16.gmra.mrb[0].mxu0 %v106
    %v221 = vpop.f32.mrb[0].mxu0
    %v222 = vadd.f32 %v77, %v221
    %v223 = vpop.f32.mrb[0].mxu0
    %v224 = vpop.f32.mrb[0].mxu0
    %v225 = vadd.f32 %v77, %v224
    %v226 = vpop.f32.mrb[0].mxu0
    %227 = vmatprep.mubr.bf16.mxu0 0
    %228 = vmatmul.mubr.bf16.gmra.mrb[0].mxu0 %v107
    %v229 = vpop.f32.mrb[0].mxu0
    %v230 = vadd.f32 %v77, %v229
    %v231 = vpop.f32.mrb[0].mxu0
    %v232 = vpop.f32.mrb[0].mxu0
    %v233 = vadd.f32 %v77, %v232
    %v234 = vpop.f32.mrb[0].mxu0
    %235 = vmatprep.mubr.bf16.mxu0 0
    %236 = vmatmul.mubr.bf16.gmra.mrb[0].mxu0 %v108
    %v237 = vpop.f32.mrb[0].mxu0
    %v238 = vadd.f32 %v77, %v237
    %v239 = vpop.f32.mrb[0].mxu0
    %v240 = vpop.f32.mrb[0].mxu0
    %v241 = vadd.f32 %v77, %v240
    %v242 = vpop.f32.mrb[0].mxu0
    %243 = vdwg.mxu0
    %vm244 = vcmp.ge.f32.partialorder %v198, 0.0
    %vm245 = vcmp.ge.f32.partialorder %v201, 0.0
    %vm246 = vcmp.ge.f32.partialorder %v206, 0.0
    %vm247 = vcmp.ge.f32.partialorder %v209, 0.0
    %vm248 = vcmp.ge.f32.partialorder %v214, 0.0
    %vm249 = vcmp.ge.f32.partialorder %v217, 0.0
    %vm250 = vcmp.ge.f32.partialorder %v222, 0.0
    %vm251 = vcmp.ge.f32.partialorder %v225, 0.0
    %vm252 = vcmp.ge.f32.partialorder %v230, 0.0
    %vm253 = vcmp.ge.f32.partialorder %v233, 0.0
    %vm254 = vcmp.ge.f32.partialorder %v238, 0.0
    %vm255 = vcmp.ge.f32.partialorder %v241, 0.0
    %v256 = vmul.f32 %v198, 0.1
    %v257 = vmul.f32 %v201, 0.1
    %v258 = vmul.f32 %v206, 0.1
    %v259 = vmul.f32 %v209, 0.1
    %v260 = vmul.f32 %v214, 0.1
    %v261 = vmul.f32 %v217, 0.1
    %v262 = vmul.f32 %v222, 0.1
    %v263 = vmul.f32 %v225, 0.1
    %v264 = vmul.f32 %v230, 0.1
    %v265 = vmul.f32 %v233, 0.1
    %v266 = vmul.f32 %v238, 0.1
    %v267 = vmul.f32 %v241, 0.1
    %v268 = vsel %vm244, %v198, %v256
    %v269 = vsel %vm245, %v201, %v257
    %v270 = vsel %vm246, %v206, %v258
    %v271 = vsel %vm247, %v209, %v259
    %v272 = vsel %vm248, %v214, %v260
    %v273 = vsel %vm249, %v217, %v261
    %v274 = vsel %vm250, %v222, %v262
    %v275 = vsel %vm251, %v225, %v263
    %v276 = vsel %vm252, %v230, %v264
    %v277 = vsel %vm253, %v233, %v265
    %v278 = vsel %vm254, %v238, %v266
    %v279 = vsel %vm255, %v241, %v267
    %280 = vst [vmem:[#allocation7] sm:$0xff] %v268
    %281 = vst [vmem:[#allocation7 + $0x8] sm:$0xff] %v269
    %282 = vst [vmem:[#allocation7 + $0x10] sm:$0xff] %v270
    %283 = vst [vmem:[#allocation7 + $0x18] sm:$0xff] %v271
    %284 = vst [vmem:[#allocation7 + $0x20] sm:$0xff] %v272
    %285 = vst [vmem:[#allocation7 + $0x28] sm:$0xff] %v273
    %286 = vst [vmem:[#allocation7 + $0x30] sm:$0xff] %v274
    %287 = vst [vmem:[#allocation7 + $0x38] sm:$0xff] %v275
    %288 = vst [vmem:[#allocation7 + $0x40] sm:$0xff] %v276
    %289 = vst [vmem:[#allocation7 + $0x48] sm:$0xff] %v277
    %290 = vst [vmem:[#allocation7 + $0x50] sm:$0xff] %v278
    %291 = vst [vmem:[#allocation7 + $0x58] sm:$0xff] %v279
    // Predicated region
    $region22: #{tpu_custom_call.1} parent=1 // pred_check
      _
    $region23: #{tpu_custom_call.1} parent=1 // pred_check_branch
      %293 = sbr.rel (0) target = $region25
    $region24: #{tpu_custom_call.1} parent=1 // pred_region
      %s295 = ssub.s32 1536, 1536
      %296 = vsyncadd [#allocation4], %s295
      %s297 = sshll.u32 [#allocation7], 4
      %s298 = int_to_ptr.vmem [resolvable:$true] %s297
      %303 = dma.vmem_to_hbm [thread:$0]  %s298, 1536, %s3, [#allocation4], 128, 128, 8
    $region25: #{tpu_custom_call.1} parent=1 // pred_fallthru
      _
    // Predicated region
    $region26: #{tpu_custom_call.1} parent=1 // pred_check
      _
    $region27: #{tpu_custom_call.1} parent=1 // pred_check_branch
      %305 = sbr.rel (0) target = $region29
    $region28: #{tpu_custom_call.1} parent=1 // pred_region
      %306 = dma.done [#allocation4], 1536
    $region29: #{tpu_custom_call.1} parent=1 // pred_fallthru
      _
    %307 = vsyncpa [#allocation3], 1
    %308 = vsyncpa [#allocation6], 1
    %309 = vsyncpa [#allocation4], 1

</llo_original>
